<compile_context>
chip_gen: v7x
topology: tpu7x:2x2x1
jax: 0.10.0
libtpu: 0.0.40
codegen_flags: <defaults>
</compile_context>

<pallas_src>
import math

import jax
import jax.numpy as jnp
from jax.experimental import pallas as pl
from jax.experimental.pallas import tpu as pltpu

# Explicit scoped-VMEM request: v5e's default is only 16 MiB, which would not
# hold 3 operands x 2 buffers x 4 MiB tiles. 32 MiB is safe on v5e/v6e (128 MiB
# physical VMEM) and on v7x (64 MiB physical VMEM).
_VMEM_LIMIT_BYTES = 32 * 1024 * 1024


def _cdiv(a, b):
    return -(-a // b)


def _mul2_kernel(x_ref, y_ref, o_ref):
    # One VMEM tile: x tile is (br, bm, C); y tile is (br, bm, C), (br, 1, 1),
    # (1, bm, C) or (1, 1, 1) -- jnp broadcasting handles all of them. Dtype
    # casts run on the VPU, which has plenty of idle slots in a mem-bound op.
    o_ref[...] = x_ref[...].astype(o_ref.dtype) * y_ref[...].astype(o_ref.dtype)


def _make_const_kernel(const):
    # Python-scalar multiplier folded into the kernel: zero extra operands.
    def kernel(x_ref, o_ref):
        o_ref[...] = x_ref[...].astype(o_ref.dtype) * const

    return kernel


def _tile_target_bytes():
    """Per-buffer tile target (~4 MiB), capped by the chip's VMEM capacity."""
    target = 4 * 1024 * 1024
    try:
        vmem = pltpu.get_tpu_info().vmem_capacity_bytes
        target = min(target, max(512 * 1024, vmem // 16))
    except Exception:  # interpret mode / older runtimes: keep the 4 MiB default
        pass
    return target


def _choose_blocks(R, M, C, itemsize, target):
    """Pick (block_r, block_m) for the canonical (R, M, C) view.

    C is never tiled (it is the array's own trailing dim, so a full-extent
    last block dim is always a legal BlockSpec regardless of 128-alignment).
    """
    c_pad = _cdiv(max(C, 1), 128) * 128            # VMEM lane padding
    m_pad = _cdiv(max(M, 1), 8) * 8                # VMEM sublane padding
    slab = m_pad * c_pad * itemsize                # one full-M row of the view

    if slab <= target:
        block_m = M
        block_r = min(R, max(1, target // slab))
    else:
        block_r = 1
        # Multiple of 32 keeps the second-to-last block dim legal for every
        # dtype (f32/bf16/int8 packing).
        block_m = min(M, max(32, (target // (c_pad * itemsize)) // 32 * 32))

    # Keep >= 8 grid steps on non-trivial slabs so each TensorCore (2 on v7x,
    # dimension_semantics="parallel") gets >= 4 pipelined steps and the
    # writeback DMA of step i overlaps the fetch of step i+1.
    total_bytes = R * m_pad * c_pad * itemsize
    if total_bytes >= (4 << 20):
        steps = _cdiv(R, block_r) * _cdiv(M, block_m)
        if steps < 8 and R >= 8:
            block_r = max(1, R // 8)

    return block_r, block_m


def _default_rmc(shape):
    """Canonical (R, M, C) view that only merges leading dims (layout-safe)."""
    nd = len(shape)
    if nd == 0:
        return 1, 1, 1
    if nd == 1:
        # TODO(synk): a very large non-128-aligned 1-D input becomes a single
        # block; fine for this module's typical activation shapes.
        return 1, 1, shape[0]
    return math.prod(shape[:-2]), shape[-2], shape[-1]


def _launch3(a3, b3, b_mode, out_dtype, out_shape, const=None):
    """Run the elementwise multiply on the canonical 3-D (R, M, C) views."""
    R, M, C = a3.shape
    itemsize = max(jnp.dtype(a3.dtype).itemsize, jnp.dtype(out_dtype).itemsize,
                   jnp.dtype(b3.dtype).itemsize if b3 is not None else 0)
    block_r, block_m = _choose_blocks(R, M, C, itemsize, _tile_target_bytes())
    grid = (_cdiv(R, block_r), _cdiv(M, block_m))

    big_spec = pl.BlockSpec((block_r, block_m, C), lambda i, j: (i, j, 0))

    if b_mode == "const":
        kernel = _make_const_kernel(const)
        in_specs = [big_spec]
        operands = (a3,)
    else:
        kernel = _mul2_kernel
        if b_mode == "scalar":   # size-1 tensor: resident block, never re-DMA'd
            b_spec = pl.BlockSpec((1, 1, 1), lambda i, j: (0, 0, 0))
        elif b_mode == "col":    # varies along R only
            b_spec = pl.BlockSpec((block_r, 1, 1), lambda i, j: (i, 0, 0))
        elif b_mode == "row":    # varies along (M, C) only
            b_spec = pl.BlockSpec((1, block_m, C), lambda i, j: (0, j, 0))
        else:                    # "full": same tiling as the big operand
            b_spec = big_spec
        in_specs = [big_spec, b_spec]
        operands = (a3, b3)

    out3 = pl.pallas_call(
        kernel,
        out_shape=jax.ShapeDtypeStruct((R, M, C), out_dtype),
        grid=grid,
        in_specs=in_specs,
        out_specs=big_spec,
        compiler_params=pltpu.CompilerParams(
            dimension_semantics=("parallel", "parallel"),
            vmem_limit_bytes=_VMEM_LIMIT_BYTES,
        ),
    )(*operands)
    return out3.reshape(out_shape)


def mul_functional(x, y):
    """Semantics of torch.mul(x, y): elementwise multiply with broadcasting.

    `y` may be a jnp array (any broadcastable shape) or a Python scalar.
    """
    x = jnp.asarray(x)

    # ---- Python scalar: fold into the kernel as a closure constant. ----------
    if isinstance(y, (bool, int, float)):
        # TODO(synk): integer-tensor * python-float promotion may differ from
        # torch (torch picks the default float dtype); matches for float32.
        out_dtype = jnp.result_type(x.dtype, y)
        out_shape = x.shape
        if x.size == 0:
            return jnp.zeros(out_shape, dtype=out_dtype)
        R, M, C = _default_rmc(out_shape)
        return _launch3(x.reshape(R, M, C), None, "const", out_dtype, out_shape,
                        const=y)

    y = jnp.asarray(y)
    out_dtype = jnp.result_type(x.dtype, y.dtype)
    out_shape = tuple(jnp.broadcast_shapes(x.shape, y.shape))
    n = math.prod(out_shape)
    if n == 0:
        return jnp.zeros(out_shape, dtype=out_dtype)

    # torch.mul is commutative: `a` is the large operand, `b` the small one.
    a, b = (x, y) if x.size >= y.size else (y, x)

    # ---- size-1 tensor: resident (1,1,1) VMEM block. --------------------------
    if b.size == 1:
        R, M, C = _default_rmc(out_shape)
        return _launch3(a.reshape(R, M, C), b.reshape(1, 1, 1), "scalar",
                        out_dtype, out_shape)

    # ---- identical shapes: straight tiled multiply. ---------------------------
    if a.shape == b.shape:
        R, M, C = _default_rmc(out_shape)
        return _launch3(a.reshape(R, M, C), b.reshape(R, M, C), "full",
                        out_dtype, out_shape)

    if a.size != n:
        # Both operands genuinely need expansion (e.g. (2,1,3) * (1,4,3)).
        # TODO(synk): rare; materializes both broadcasts instead of streaming.
        a = jnp.broadcast_to(a, out_shape)
        b = jnp.broadcast_to(b, out_shape)
        R, M, C = _default_rmc(out_shape)
        return _launch3(a.reshape(R, M, C), b.reshape(R, M, C), "full",
                        out_dtype, out_shape)

    # ---- general broadcast: `a` covers the output, `b` varies on a subset. ----
    a = a.reshape(out_shape)               # only prepends size-1 dims -> free
    nd = len(out_shape)
    b_pad = (1,) * (nd - b.ndim) + tuple(b.shape)

    # COL pattern: b is broadcast over a trailing run of dims, e.g. (C,1,1)
    # against (N,C,H,W). Present b as an (R,1,1) column; at most R = n/(M*C)
    # elements are materialized (vs n for a full broadcast_to).
    s = nd
    while s > 0 and b_pad[s - 1] == 1:
        s -= 1
    if 0 < s < nd:
        R = math.prod(out_shape[:s])
        M = math.prod(out_shape[s:-1])
        C = out_shape[-1]
        b_lead = b.reshape(b_pad[:s])
        if b_pad[:s] != tuple(out_shape[:s]):
            b_lead = jnp.broadcast_to(b_lead, out_shape[:s])  # tiny: R elements
        return _launch3(a.reshape(R, M, C), b_lead.reshape(R, 1, 1), "col",
                        out_dtype, out_shape)

    # ROW pattern: b matches a trailing suffix exactly, e.g. (W,) or (H,W)
    # against (N,C,H,W). Zero materialization: b is a (1,M,C) block.
    t = 0
    while t < nd and b_pad[t] == 1:
        t += 1
    if t < nd and b_pad[t:] == tuple(out_shape[t:]):
        R = math.prod(out_shape[:t])
        M = math.prod(out_shape[t:-1])
        C = out_shape[-1]
        return _launch3(a.reshape(R, M, C), b.reshape(1, M, C), "row",
                        out_dtype, out_shape)

    # TODO(synk): interleaved broadcast patterns (e.g. (4,1,16) vs (2,4,8,16))
    # fall back to materializing the *small* operand only.
    b = jnp.broadcast_to(b.reshape(b_pad), out_shape)
    R, M, C = _default_rmc(out_shape)
    return _launch3(a.reshape(R, M, C), b.reshape(R, M, C), "full",
                    out_dtype, out_shape)


if __name__ == "__main__":
    key = jax.random.PRNGKey(0)
    kx, ky = jax.random.split(key)

    x = jax.random.normal(kx, (2, 4, 16, 16), dtype=jnp.float32)
    y = jax.random.normal(ky, (2, 4, 16, 16), dtype=jnp.float32)

    # 1) Tensor * tensor, same NCHW shape.
    out_tt = mul_functional(x, y)
    jax.block_until_ready(out_tt)
    assert out_tt.shape == (2, 4, 16, 16) and out_tt.dtype == jnp.float32
    assert jnp.allclose(out_tt, x * y, atol=1e-6, rtol=1e-6)

    # 2) Tensor * Python float (folded into the kernel as a constant).
    out_ts = mul_functional(x, 2.5)
    jax.block_until_ready(out_ts)
    assert out_ts.dtype == jnp.float32
    assert jnp.allclose(out_ts, x * 2.5, atol=1e-6, rtol=1e-6)

    # 3) Per-channel broadcast (C,1,1): streamed as an (R,1,1) column operand.
    yc = jax.random.normal(ky, (4, 1, 1), dtype=jnp.float32)
    out_col = mul_functional(x, yc)
    jax.block_until_ready(out_col)
    assert jnp.allclose(out_col, x * yc, atol=1e-6, rtol=1e-6)

    # 4) Trailing broadcast (W,): streamed as a (1,M,C) row operand.
    yw = jax.random.normal(ky, (16,), dtype=jnp.float32)
    out_row = mul_functional(x, yw)
    jax.block_until_ready(out_row)
    assert jnp.allclose(out_row, x * yw, atol=1e-6, rtol=1e-6)

    # 5) Mixed dtype (bf16 tensor * f32 tensor): cast happens inside the kernel.
    x_bf16 = x.astype(jnp.bfloat16)
    out_mx = mul_functional(x_bf16, y)
    jax.block_until_ready(out_mx)
    assert out_mx.dtype == jnp.float32
    assert jnp.allclose(out_mx, x_bf16.astype(jnp.float32) * y, atol=1e-6, rtol=1e-6)

    # 6) Non-8/128-aligned shape with a Python scalar: no pad, no relayout.
    xs = jax.random.normal(kx, (3, 5, 7), dtype=jnp.float32)
    out_odd = mul_functional(xs, 0.5)
    jax.block_until_ready(out_odd)
    assert out_odd.shape == (3, 5, 7)
    assert jnp.allclose(out_odd, xs * 0.5, atol=1e-6, rtol=1e-6)

    # 7) Size-1 tensor operand (resident (1,1,1) block).
    out_s1 = mul_functional(x, jnp.asarray([[2.0]], dtype=jnp.float32))
    jax.block_until_ready(out_s1)
    assert out_s1.shape == (2, 4, 16, 16)
    assert jnp.allclose(out_s1, x * 2.0, atol=1e-6, rtol=1e-6)

    print("KERNEL_OK")
</pallas_src>

<mosaic_0001>
module attributes {stable_mosaic.version = 11 : i64} {
  func.func @_mul2_kernel(%arg0: i32, %arg1: i32, %arg2: memref<8x16x16xf32, #tpu.memory_space<vmem>>, %arg3: memref<8x16x16xf32, #tpu.memory_space<vmem>>, %arg4: memref<8x16x16xf32, #tpu.memory_space<vmem>>) attributes {dimension_semantics = [#tpu.dimension_semantics<parallel>, #tpu.dimension_semantics<parallel>], iteration_bounds = array<i64: 1, 1>, scalar_prefetch = 0 : i64, scratch_operands = 0 : i64, tpu.core_type = #tpu.core_type<tc>, window_params = [{transform_indices = @transform_0, window_bounds = array<i64: 8, 16, 16>}, {transform_indices = @transform_1, window_bounds = array<i64: 8, 16, 16>}, {transform_indices = @transform_2, window_bounds = array<i64: 8, 16, 16>}]} {
    %c0 = arith.constant 0 : index
    %c0_0 = arith.constant 0 : index
    %c0_1 = arith.constant 0 : index
    %0 = vector.load %arg2[%c0, %c0_0, %c0_1] : memref<8x16x16xf32, #tpu.memory_space<vmem>>, vector<8x16x16xf32>
    %c0_2 = arith.constant 0 : index
    %c0_3 = arith.constant 0 : index
    %c0_4 = arith.constant 0 : index
    %1 = vector.load %arg3[%c0_2, %c0_3, %c0_4] : memref<8x16x16xf32, #tpu.memory_space<vmem>>, vector<8x16x16xf32>
    %2 = arith.mulf %0, %1 : vector<8x16x16xf32>
    %c0_5 = arith.constant 0 : index
    %c0_6 = arith.constant 0 : index
    %c0_7 = arith.constant 0 : index
    %3 = vector.load %arg4[%c0_5, %c0_6, %c0_7] : memref<8x16x16xf32, #tpu.memory_space<vmem>>, vector<8x16x16xf32>
    tpu.vector_store %arg4[%c0_5, %c0_6, %c0_7], %2 {strides = array<i32>} : memref<8x16x16xf32, #tpu.memory_space<vmem>>, vector<8x16x16xf32>,
    return
  }
  func.func @transform_0(%arg0: i32, %arg1: i32) -> (i32, i32, i32) {
    %c0_i32 = arith.constant 0 : i32
    %c0_i32_0 = arith.constant 0 : i32
    return %arg0, %arg1, %c0_i32 : i32, i32, i32
  }
  func.func @transform_1(%arg0: i32, %arg1: i32) -> (i32, i32, i32) {
    %c0_i32 = arith.constant 0 : i32
    %c0_i32_0 = arith.constant 0 : i32
    return %arg0, %arg1, %c0_i32 : i32, i32, i32
  }
  func.func @transform_2(%arg0: i32, %arg1: i32) -> (i32, i32, i32) {
    %c0_i32 = arith.constant 0 : i32
    %c0_i32_0 = arith.constant 0 : i32
    return %arg0, %arg1, %c0_i32 : i32, i32, i32
  }
}

</mosaic_0001>

<llo_original>
// kernel: tpu_custom_call.1
$region0: #{tpu_custom_call.1}
  #allocation0 [shape = 'u32[]', space=smem, size = 0x4, offset = 0x4, fixed_abs, tag = 'smem constant byte address 0x4 - core index']
  #allocation1 [shape = 'u32[144,128]{1,0:T(1,128)}', space=vmem, size = 0x12000, scoped, tag = 'internal scratch']
  %s0 = inlined_call_operand.hbm [shape: f32[8,16,16], index: 0, kind: input, shape index: {}]
  %s1 = inlined_call_operand.hbm [shape: f32[8,16,16], index: 1, kind: input, shape index: {}]
  %s2 = inlined_call_operand.hbm [shape: f32[8,16,16], index: 2, kind: output, shape index: {}]
  %s3 = sld [smem:[#allocation0]]
  $region26: #{tpu_custom_call.1} parent=0
    _
  %s5 = ssub.s32 1, %s3
  %s6 = scalar_select 0, %s5, %s3
  $region1: #{tpu_custom_call.1} parent=0
    #allocation2 [shape = 'u8[65536]{0}', space=vmem, size = 0x10000, scoped, tag = 'input window, operand 0, single buffered']
    #allocation3 [shape = 's32[1]{0}', space=sflag, size = 0x4, scoped, tag = 'scoped memory for tpu_custom_call.1']
    #allocation4 [shape = 's32[1]{0}', space=sflag, size = 0x4, scoped, tag = 'scoped memory for tpu_custom_call.1']
    #allocation5 [shape = 'u8[65536]{0}', space=vmem, size = 0x10000, scoped, tag = 'input window, operand 1, single buffered']
    #allocation6 [shape = 's32[1]{0}', space=sflag, size = 0x4, scoped, tag = 'scoped memory for tpu_custom_call.1']
    #allocation7 [shape = 'u8[65536]{0}', space=vmem, size = 0x10000, scoped, tag = 'output window, operand 0, single buffered']
    %7 = vsyncpa [#allocation3], 0
    %8 = vsyncpa [#allocation6], 0
    %9 = vsyncpa [#allocation4], 0
    // Predicated region
    $region2: #{tpu_custom_call.1} parent=1 // pred_check
      _
    $region3: #{tpu_custom_call.1} parent=1 // pred_check_branch
      %11 = sbr.rel (0) target = $region5
    $region4: #{tpu_custom_call.1} parent=1 // pred_region
      %s13 = ssub.s32 2048, 2048
      %14 = vsyncadd [#allocation3], %s13
      %s15 = sshll.u32 [#allocation2], 4
      %s16 = int_to_ptr.vmem [resolvable:$true] %s15
      %21 = dma.hbm_to_vmem [thread:$0]  %s0, 2048, %s16, [#allocation3], 128, 128, 8
    $region5: #{tpu_custom_call.1} parent=1 // pred_fallthru
      _
    // Predicated region
    $region6: #{tpu_custom_call.1} parent=1 // pred_check
      _
    $region7: #{tpu_custom_call.1} parent=1 // pred_check_branch
      %23 = sbr.rel (0) target = $region9
    $region8: #{tpu_custom_call.1} parent=1 // pred_region
      %s25 = ssub.s32 2048, 2048
      %26 = vsyncadd [#allocation6], %s25
      %s27 = sshll.u32 [#allocation5], 4
      %s28 = int_to_ptr.vmem [resolvable:$true] %s27
      %33 = dma.hbm_to_vmem [thread:$0]  %s1, 2048, %s28, [#allocation6], 128, 128, 8
    $region9: #{tpu_custom_call.1} parent=1 // pred_fallthru
      _
    // Predicated region
    $region10: #{tpu_custom_call.1} parent=1 // pred_check
      _
    $region11: #{tpu_custom_call.1} parent=1 // pred_check_branch
      %35 = sbr.rel (0) target = $region13
    $region12: #{tpu_custom_call.1} parent=1 // pred_region
      %36 = dma.done [#allocation3], 2048
    $region13: #{tpu_custom_call.1} parent=1 // pred_fallthru
      _
    // Predicated region
    $region14: #{tpu_custom_call.1} parent=1 // pred_check
      _
    $region15: #{tpu_custom_call.1} parent=1 // pred_check_branch
      %38 = sbr.rel (0) target = $region17
    $region16: #{tpu_custom_call.1} parent=1 // pred_region
      %39 = dma.done [#allocation6], 2048
    $region17: #{tpu_custom_call.1} parent=1 // pred_fallthru
      _
    %v40 = vld [vmem:[#allocation2] sm:$0xff]
    %v41 = vld [vmem:[#allocation2 + $0x8] sm:$0xff]
    %v42 = vld [vmem:[#allocation2 + $0x10] sm:$0xff]
    %v43 = vld [vmem:[#allocation2 + $0x18] sm:$0xff]
    %v44 = vld [vmem:[#allocation2 + $0x20] sm:$0xff]
    %v45 = vld [vmem:[#allocation2 + $0x28] sm:$0xff]
    %v46 = vld [vmem:[#allocation2 + $0x30] sm:$0xff]
    %v47 = vld [vmem:[#allocation2 + $0x38] sm:$0xff]
    %v48 = vld [vmem:[#allocation2 + $0x40] sm:$0xff]
    %v49 = vld [vmem:[#allocation2 + $0x48] sm:$0xff]
    %v50 = vld [vmem:[#allocation2 + $0x50] sm:$0xff]
    %v51 = vld [vmem:[#allocation2 + $0x58] sm:$0xff]
    %v52 = vld [vmem:[#allocation2 + $0x60] sm:$0xff]
    %v53 = vld [vmem:[#allocation2 + $0x68] sm:$0xff]
    %v54 = vld [vmem:[#allocation2 + $0x70] sm:$0xff]
    %v55 = vld [vmem:[#allocation2 + $0x78] sm:$0xff]
    %v56 = vld [vmem:[#allocation5] sm:$0xff]
    %v57 = vld [vmem:[#allocation5 + $0x8] sm:$0xff]
    %v58 = vld [vmem:[#allocation5 + $0x10] sm:$0xff]
    %v59 = vld [vmem:[#allocation5 + $0x18] sm:$0xff]
    %v60 = vld [vmem:[#allocation5 + $0x20] sm:$0xff]
    %v61 = vld [vmem:[#allocation5 + $0x28] sm:$0xff]
    %v62 = vld [vmem:[#allocation5 + $0x30] sm:$0xff]
    %v63 = vld [vmem:[#allocation5 + $0x38] sm:$0xff]
    %v64 = vld [vmem:[#allocation5 + $0x40] sm:$0xff]
    %v65 = vld [vmem:[#allocation5 + $0x48] sm:$0xff]
    %v66 = vld [vmem:[#allocation5 + $0x50] sm:$0xff]
    %v67 = vld [vmem:[#allocation5 + $0x58] sm:$0xff]
    %v68 = vld [vmem:[#allocation5 + $0x60] sm:$0xff]
    %v69 = vld [vmem:[#allocation5 + $0x68] sm:$0xff]
    %v70 = vld [vmem:[#allocation5 + $0x70] sm:$0xff]
    %v71 = vld [vmem:[#allocation5 + $0x78] sm:$0xff]
    %v72 = vmul.f32 %v40, %v56
    %v73 = vmul.f32 %v41, %v57
    %v74 = vmul.f32 %v42, %v58
    %v75 = vmul.f32 %v43, %v59
    %v76 = vmul.f32 %v44, %v60
    %v77 = vmul.f32 %v45, %v61
    %v78 = vmul.f32 %v46, %v62
    %v79 = vmul.f32 %v47, %v63
    %v80 = vmul.f32 %v48, %v64
    %v81 = vmul.f32 %v49, %v65
    %v82 = vmul.f32 %v50, %v66
    %v83 = vmul.f32 %v51, %v67
    %v84 = vmul.f32 %v52, %v68
    %v85 = vmul.f32 %v53, %v69
    %v86 = vmul.f32 %v54, %v70
    %v87 = vmul.f32 %v55, %v71
    %vm88 = vcmask 130048
    %89 = vst.msk [vmem:[#allocation7] sm:$0xff] %vm88, %v72
    %90 = vst.msk [vmem:[#allocation7 + $0x8] sm:$0xff] %vm88, %v73
    %91 = vst.msk [vmem:[#allocation7 + $0x10] sm:$0xff] %vm88, %v74
    %92 = vst.msk [vmem:[#allocation7 + $0x18] sm:$0xff] %vm88, %v75
    %93 = vst.msk [vmem:[#allocation7 + $0x20] sm:$0xff] %vm88, %v76
    %94 = vst.msk [vmem:[#allocation7 + $0x28] sm:$0xff] %vm88, %v77
    %95 = vst.msk [vmem:[#allocation7 + $0x30] sm:$0xff] %vm88, %v78
    %96 = vst.msk [vmem:[#allocation7 + $0x38] sm:$0xff] %vm88, %v79
    %97 = vst.msk [vmem:[#allocation7 + $0x40] sm:$0xff] %vm88, %v80
    %98 = vst.msk [vmem:[#allocation7 + $0x48] sm:$0xff] %vm88, %v81
    %99 = vst.msk [vmem:[#allocation7 + $0x50] sm:$0xff] %vm88, %v82
    %100 = vst.msk [vmem:[#allocation7 + $0x58] sm:$0xff] %vm88, %v83
    %101 = vst.msk [vmem:[#allocation7 + $0x60] sm:$0xff] %vm88, %v84
    %102 = vst.msk [vmem:[#allocation7 + $0x68] sm:$0xff] %vm88, %v85
    %103 = vst.msk [vmem:[#allocation7 + $0x70] sm:$0xff] %vm88, %v86
    %104 = vst.msk [vmem:[#allocation7 + $0x78] sm:$0xff] %vm88, %v87
    // Predicated region
    $region18: #{tpu_custom_call.1} parent=1 // pred_check
      _
    $region19: #{tpu_custom_call.1} parent=1 // pred_check_branch
      %106 = sbr.rel (0) target = $region21
    $region20: #{tpu_custom_call.1} parent=1 // pred_region
      %s108 = ssub.s32 2048, 2048
      %109 = vsyncadd [#allocation4], %s108
      %s110 = sshll.u32 [#allocation7], 4
      %s111 = int_to_ptr.vmem [resolvable:$true] %s110
      %116 = dma.vmem_to_hbm [thread:$0]  %s111, 2048, %s2, [#allocation4], 128, 128, 8
    $region21: #{tpu_custom_call.1} parent=1 // pred_fallthru
      _
    // Predicated region
    $region22: #{tpu_custom_call.1} parent=1 // pred_check
      _
    $region23: #{tpu_custom_call.1} parent=1 // pred_check_branch
      %118 = sbr.rel (0) target = $region25
    $region24: #{tpu_custom_call.1} parent=1 // pred_region
      %119 = dma.done [#allocation4], 2048
    $region25: #{tpu_custom_call.1} parent=1 // pred_fallthru
      _
    %120 = vsyncpa [#allocation3], 1
    %121 = vsyncpa [#allocation6], 1
    %122 = vsyncpa [#allocation4], 1

</llo_original>
